<compile_context>
chip_gen: v7x
topology: tpu7x:2x2x1
jax: 0.10.0
libtpu: 0.0.40
codegen_flags: <defaults>
</compile_context>

<pallas_src>
import numpy as np
import jax
import jax.numpy as jnp
from jax.experimental import pallas as pl
from jax.experimental.pallas import tpu as pltpu


def _round_up(x: int, m: int) -> int:
    return (x + m - 1) // m * m


def readout_kernel(h_ref, w1_ref, b1_ref, w2_ref, b2_ref, o_ref):
    # h: [TB, E] f32 | w1: [E, H] bf16 | b1: [1, H] f32
    # w2: [H, A_pad] bf16 | b2: [1, A_pad] f32 (padded cols = -1e30) | o: [TB, A_pad] f32
    h = h_ref[...].astype(jnp.bfloat16)
    z1 = jnp.dot(h, w1_ref[...], preferred_element_type=jnp.float32) + b1_ref[...]
    a1 = jnp.maximum(z1, 0.0)                                   # ReLU (VPU, f32)
    z2 = (jnp.dot(a1.astype(jnp.bfloat16), w2_ref[...],
                  preferred_element_type=jnp.float32) + b2_ref[...])
    # numerically-stable softmax over the (lane-dense) feature axis;
    # padded columns carry -1e30 logits -> exp underflows to exactly 0.
    z2 = z2 - jnp.max(z2, axis=-1, keepdims=True)
    e = jnp.exp(z2)                                             # EUP
    denom = jnp.sum(e, axis=-1, keepdims=True)                  # XLU reduce
    o_ref[...] = (e * pl.reciprocal(denom, approx=True)).astype(o_ref.dtype)


def readout_network(h, w1, b1, w2, b2, *, block_b: int = 256):
    """h:[B,E] f32, w1:[E,H], b1:[1,H], w2:[H,A], b2:[1,A] -> softmax probs [B,A] f32.

    block_b: target batch tile. 256 fills the v6e/v7x MXU; use 128 on v5e.
    """
    B, E = h.shape
    H = w1.shape[1]
    A = w2.shape[1]

    # --- lane-dense action dimension -------------------------------------
    A_pad = _round_up(A, 128)
    if A_pad != A:
        w2 = jnp.pad(w2, ((0, 0), (0, A_pad - A)))                      # zero weights
        b2 = jnp.pad(b2, ((0, 0), (0, A_pad - A)), constant_values=-1e30)  # -inf-ish logits

    # bf16 weights for native-rate MXU (f32 accumulation happens in-kernel).
    w1 = w1.astype(jnp.bfloat16)
    w2 = w2.astype(jnp.bfloat16)

    # --- batch tiling ------------------------------------------------------
    tb = min(block_b, _round_up(B, 8))      # shrink tile for tiny batches (sublane mult of 8)
    B_pad = _round_up(B, tb)
    if B_pad != B:
        h = jnp.pad(h, ((0, B_pad - B), (0, 0)))
    grid = (B_pad // tb,)

    out = pl.pallas_call(
        readout_kernel,
        out_shape=jax.ShapeDtypeStruct((B_pad, A_pad), jnp.float32),
        grid_spec=pltpu.PrefetchScalarGridSpec(
            num_scalar_prefetch=0,
            grid=grid,
            in_specs=[
                pl.BlockSpec((tb, E), lambda i: (i, 0)),       # streamed per batch tile
                pl.BlockSpec((E, H), lambda i: (0, 0)),        # resident weights
                pl.BlockSpec((1, H), lambda i: (0, 0)),        # resident bias
                pl.BlockSpec((H, A_pad), lambda i: (0, 0)),    # resident weights
                pl.BlockSpec((1, A_pad), lambda i: (0, 0)),    # resident bias
            ],
            out_specs=pl.BlockSpec((tb, A_pad), lambda i: (i, 0)),
        ),
        compiler_params=pltpu.CompilerParams(
            dimension_semantics=("parallel",)),                # shard batch across TCs (v7x)
    )(h, w1, b1, w2, b2)

    return out[:B, :A]
    # TODO(synk): for maximum benefit at small B, fuse this readout into the
    # upstream kernel that produces h (single pallas_call / cross-call prefetch).


def init_params(key, embedding_size, hidden_size, action_dims):
    """Deterministic init mimicking PyTorch Linear's uniform(-1/sqrt(fan_in), 1/sqrt(fan_in))."""
    out_size = int(np.prod(action_dims))
    k1, k2, k3, k4 = jax.random.split(key, 4)
    lim1 = 1.0 / np.sqrt(embedding_size)
    lim2 = 1.0 / np.sqrt(hidden_size)
    w1 = jax.random.uniform(k1, (embedding_size, hidden_size), jnp.float32, -lim1, lim1)
    b1 = jax.random.uniform(k2, (1, hidden_size), jnp.float32, -lim1, lim1)
    w2 = jax.random.uniform(k3, (hidden_size, out_size), jnp.float32, -lim2, lim2)
    b2 = jax.random.uniform(k4, (1, out_size), jnp.float32, -lim2, lim2)
    return w1, b1, w2, b2


def readout_reference(h, w1, b1, w2, b2):
    """Pure-JAX reference with the same bf16-operand / f32-accumulate matmul recipe."""
    z1 = jnp.dot(h.astype(jnp.bfloat16), w1.astype(jnp.bfloat16),
                 preferred_element_type=jnp.float32) + b1
    a1 = jnp.maximum(z1, 0.0)
    z2 = jnp.dot(a1.astype(jnp.bfloat16), w2.astype(jnp.bfloat16),
                 preferred_element_type=jnp.float32) + b2
    return jax.nn.softmax(z2, axis=1)


if __name__ == "__main__":
    embedding_size = 128
    hidden_size = 128
    action_dims = [3, 4, 6]        # prod = 72  (padded to 128 lanes inside the kernel)
    batch = 64                     # small demo batch; block_b=32 exercises the grid/pipeline

    key = jax.random.PRNGKey(0)
    k_h, k_p = jax.random.split(key)
    h = jax.random.normal(k_h, (batch, embedding_size), jnp.float32)
    w1, b1, w2, b2 = init_params(k_p, embedding_size, hidden_size, action_dims)

    out = readout_network(h, w1, b1, w2, b2, block_b=32)
    out = jax.block_until_ready(out)

    ref = readout_reference(h, w1, b1, w2, b2)
    A = int(np.prod(action_dims))
    assert out.shape == (batch, A)
    # bf16 matmul operands + approx reciprocal -> slightly relaxed tolerances.
    np.testing.assert_allclose(np.asarray(out), np.asarray(ref), rtol=5e-3, atol=2e-3)
    np.testing.assert_allclose(np.asarray(out).sum(axis=1), np.ones(batch),
                               rtol=2e-3, atol=2e-3)

    print("KERNEL_OK")
</pallas_src>

<mosaic_0001>
module attributes {stable_mosaic.version = 11 : i64} {
  func.func @readout_kernel(%arg0: i32, %arg1: memref<32x128xf32, #tpu.memory_space<vmem>>, %arg2: memref<128x128xbf16, #tpu.memory_space<vmem>>, %arg3: memref<1x128xf32, #tpu.memory_space<vmem>>, %arg4: memref<128x128xbf16, #tpu.memory_space<vmem>>, %arg5: memref<1x128xf32, #tpu.memory_space<vmem>>, %arg6: memref<32x128xf32, #tpu.memory_space<vmem>>) attributes {dimension_semantics = [#tpu.dimension_semantics<parallel>], iteration_bounds = array<i64: 2>, scalar_prefetch = 0 : i64, scratch_operands = 0 : i64, tpu.core_type = #tpu.core_type<tc>, window_params = [{transform_indices = @transform_0, window_bounds = array<i64: 32, 128>}, {pipeline_mode = #tpu.pipeline_mode<synchronous>, transform_indices = @transform_1, window_bounds = array<i64: 128, 128>}, {pipeline_mode = #tpu.pipeline_mode<synchronous>, transform_indices = @transform_2, window_bounds = array<i64: 1, 128>}, {pipeline_mode = #tpu.pipeline_mode<synchronous>, transform_indices = @transform_3, window_bounds = array<i64: 128, 128>}, {pipeline_mode = #tpu.pipeline_mode<synchronous>, transform_indices = @transform_4, window_bounds = array<i64: 1, 128>}, {transform_indices = @transform_5, window_bounds = array<i64: 32, 128>}]} {
    %c0 = arith.constant 0 : index
    %c0_0 = arith.constant 0 : index
    %0 = vector.load %arg1[%c0, %c0_0] : memref<32x128xf32, #tpu.memory_space<vmem>>, vector<32x128xf32>
    %1 = arith.truncf %0 : vector<32x128xf32> to vector<32x128xbf16>
    %c0_1 = arith.constant 0 : index
    %c0_2 = arith.constant 0 : index
    %2 = vector.load %arg2[%c0_1, %c0_2] : memref<128x128xbf16, #tpu.memory_space<vmem>>, vector<128x128xbf16>
    %cst = arith.constant dense<0.000000e+00> : vector<32x128xf32>
    %3 = tpu.matmul %1, %2, %cst {dimension_numbers = #tpu.dot_dimension_numbers<[1], [0], [0], [1], [0, 0, 1, 1], [], []>} : vector<32x128xbf16>, vector<128x128xbf16>, vector<32x128xf32> -> vector<32x128xf32>
    %c0_3 = arith.constant 0 : index
    %c0_4 = arith.constant 0 : index
    %4 = vector.load %arg3[%c0_3, %c0_4] : memref<1x128xf32, #tpu.memory_space<vmem>>, vector<1x128xf32>
    %5 = vector.broadcast %4 : vector<1x128xf32> to vector<32x128xf32>
    %6 = arith.addf %3, %5 : vector<32x128xf32>
    %cst_5 = arith.constant 0.000000e+00 : f32
    %7 = vector.broadcast %cst_5 : f32 to vector<32x128xf32>
    %8 = arith.maximumf %6, %7 : vector<32x128xf32>
    %9 = arith.truncf %8 : vector<32x128xf32> to vector<32x128xbf16>
    %c0_6 = arith.constant 0 : index
    %c0_7 = arith.constant 0 : index
    %10 = vector.load %arg4[%c0_6, %c0_7] : memref<128x128xbf16, #tpu.memory_space<vmem>>, vector<128x128xbf16>
    %cst_8 = arith.constant dense<0.000000e+00> : vector<32x128xf32>
    %11 = tpu.matmul %9, %10, %cst_8 {dimension_numbers = #tpu.dot_dimension_numbers<[1], [0], [0], [1], [0, 0, 1, 1], [], []>} : vector<32x128xbf16>, vector<128x128xbf16>, vector<32x128xf32> -> vector<32x128xf32>
    %c0_9 = arith.constant 0 : index
    %c0_10 = arith.constant 0 : index
    %12 = vector.load %arg5[%c0_9, %c0_10] : memref<1x128xf32, #tpu.memory_space<vmem>>, vector<1x128xf32>
    %13 = vector.broadcast %12 : vector<1x128xf32> to vector<32x128xf32>
    %14 = arith.addf %11, %13 : vector<32x128xf32>
    %cst_11 = arith.constant dense<0xFF800000> : vector<32xf32>
    %15 = vector.multi_reduction <maximumf>, %14, %cst_11 [1] : vector<32x128xf32> to vector<32xf32>
    %16 = vector.shape_cast %15 : vector<32xf32> to vector<32x1xf32>
    %17 = vector.broadcast %16 : vector<32x1xf32> to vector<32x128xf32>
    %18 = arith.subf %14, %17 : vector<32x128xf32>
    %19 = math.exp %18 : vector<32x128xf32>
    %cst_12 = arith.constant dense<0.000000e+00> : vector<32xf32>
    %20 = vector.multi_reduction <add>, %19, %cst_12 [1] : vector<32x128xf32> to vector<32xf32>
    %21 = vector.shape_cast %20 : vector<32xf32> to vector<32x1xf32>
    %22 = tpu.reciprocal %21 {approx = true} : vector<32x1xf32> -> vector<32x1xf32>
    %23 = vector.broadcast %22 : vector<32x1xf32> to vector<32x128xf32>
    %24 = arith.mulf %19, %23 : vector<32x128xf32>
    %c0_13 = arith.constant 0 : index
    %c0_14 = arith.constant 0 : index
    %25 = vector.load %arg6[%c0_13, %c0_14] : memref<32x128xf32, #tpu.memory_space<vmem>>, vector<32x128xf32>
    tpu.vector_store %arg6[%c0_13, %c0_14], %24 {strides = array<i32>} : memref<32x128xf32, #tpu.memory_space<vmem>>, vector<32x128xf32>,
    return
  }
  func.func @transform_0(%arg0: i32) -> (i32, i32) {
    %c0_i32 = arith.constant 0 : i32
    %c0_i32_0 = arith.constant 0 : i32
    return %arg0, %c0_i32 : i32, i32
  }
  func.func @transform_1(%arg0: i32) -> (i32, i32) {
    %c0_i32 = arith.constant 0 : i32
    %c0_i32_0 = arith.constant 0 : i32
    %c0_i32_1 = arith.constant 0 : i32
    return %c0_i32, %c0_i32_0 : i32, i32
  }
  func.func @transform_2(%arg0: i32) -> (i32, i32) {
    %c0_i32 = arith.constant 0 : i32
    %c0_i32_0 = arith.constant 0 : i32
    %c0_i32_1 = arith.constant 0 : i32
    return %c0_i32, %c0_i32_0 : i32, i32
  }
  func.func @transform_3(%arg0: i32) -> (i32, i32) {
    %c0_i32 = arith.constant 0 : i32
    %c0_i32_0 = arith.constant 0 : i32
    %c0_i32_1 = arith.constant 0 : i32
    return %c0_i32, %c0_i32_0 : i32, i32
  }
  func.func @transform_4(%arg0: i32) -> (i32, i32) {
    %c0_i32 = arith.constant 0 : i32
    %c0_i32_0 = arith.constant 0 : i32
    %c0_i32_1 = arith.constant 0 : i32
    return %c0_i32, %c0_i32_0 : i32, i32
  }
  func.func @transform_5(%arg0: i32) -> (i32, i32) {
    %c0_i32 = arith.constant 0 : i32
    %c0_i32_0 = arith.constant 0 : i32
    return %arg0, %c0_i32 : i32, i32
  }
}

</mosaic_0001>

<llo_original>
// kernel: tpu_custom_call.1
$region0: #{tpu_custom_call.1}
  #allocation0 [shape = 'u32[]', space=smem, size = 0x4, offset = 0x4, fixed_abs, tag = 'smem constant byte address 0x4 - core index']
  #allocation1 [shape = 'u32[144,128]{1,0:T(1,128)}', space=vmem, size = 0x12000, scoped, tag = 'internal scratch']
  %s0 = inlined_call_operand.hbm [shape: f32[64,128], index: 0, kind: input, shape index: {}]
  %s1 = inlined_call_operand.hbm [shape: bf16[128,128], index: 1, kind: input, shape index: {}]
  %s2 = inlined_call_operand.vmem [shape: f32[1,128], index: 2, kind: input, shape index: {}]
  %s3 = inlined_call_operand.hbm [shape: bf16[128,128], index: 3, kind: input, shape index: {}]
  %s4 = inlined_call_operand.vmem [shape: f32[1,128], index: 4, kind: input, shape index: {}]
  %s5 = inlined_call_operand.hbm [shape: f32[64,128], index: 5, kind: output, shape index: {}]
  %s6 = sld [smem:[#allocation0]]
  $region65: #{tpu_custom_call.1} parent=0
    _
  %s8 = ssub.s32 1, %s6
  %s9 = scalar_select 0, %s8, %s6
  $region1: #{tpu_custom_call.1} parent=0
    #allocation2 [shape = 'u8[32768]{0}', space=vmem, size = 0x8000, scoped, tag = 'input window, operand 0']
    #allocation3 [shape = 's32[2]{0}', space=sflag, size = 0x8, scoped, tag = 'scoped memory for tpu_custom_call.1']
    #allocation4 [shape = 's32[2]{0}', space=sflag, size = 0x8, scoped, tag = 'scoped memory for tpu_custom_call.1']
    #allocation5 [shape = 'u8[32768]{0}', space=vmem, size = 0x8000, scoped, tag = 'input window, operand 1, single buffered']
    #allocation6 [shape = 's32[1]{0}', space=sflag, size = 0x4, scoped, tag = 'scoped memory for tpu_custom_call.1']
    #allocation7 [shape = 'u8[32768]{0}', space=vmem, size = 0x8000, scoped, tag = 'input window, operand 3, single buffered']
    #allocation8 [shape = 'u8[32768]{0}', space=vmem, size = 0x8000, scoped, tag = 'output window, operand 0']
    %10 = vsyncpa [#allocation3], 0
    %s11 = scalar_lea.sflag [#allocation3], 1
    %12 = vsyncpa %s11, 0
    %13 = vsyncpa [#allocation6], 0
    %14 = vsyncpa [#allocation4], 0
    %s15 = scalar_lea.sflag [#allocation4], 1
    %16 = vsyncpa %s15, 0
    loop: start=0, step=1, limit=4
    $region2: #{tpu_custom_call.1} parent=1 // loop_pre_header
      _
    $region3: #{tpu_custom_call.1} parent=1 // loop_header
      %s18 = sphi 0, %s22
      %p19 = scmp.ge.s32.totalorder %s18, 4
      %s28 = sphi 0, %s30
      %s31 = sphi 0, %s28
      %s32 = sphi 0, %s31
      %s48 = sphi 0, %s32
      %s52 = sphi 0, %s52
      %s54 = sphi 0, %s52
      %s55 = sphi 0, %s54
      %s69 = sphi 0, %s55
      %s73 = sphi 0, %s73
      %s75 = sphi 0, %s73
      %s76 = sphi 0, %s75
      %s90 = sphi 0, %s76
      %s94 = sphi 0, %s94
      %s96 = sphi 0, %s94
      %s97 = sphi 0, %s96
      %s111 = sphi 0, %s97
      %s115 = sphi 0, %s115
      %s117 = sphi 0, %s115
      %s118 = sphi 0, %s117
      %s132 = sphi 0, %s118
      %s138 = sphi 0, %s140
      %s141 = sphi 0, %s138
      %s142 = sphi 0, %s141
      %s158 = sphi 0, %s142
    $region4: #{tpu_custom_call.1} parent=1 // loop_header_branch
      %21 = sbr.rel (%p19) target = $region8
    $region5: #{tpu_custom_call.1} parent=1 // loop_body
      %s23 = ssub.s32 %s18, 1
      %s24 = ssub.s32 %s18, 2
      %s25 = sadd.s32 %s18, 1
      %s26 = ssub.s32 %s18, %s25
      %p27 = scmp.eq.s32.totalorder %s26, 0
      %s29 = sadd.s32 %s28, 1
      %s30 = scalar_select %p27, %s28, %s29
      %p33 = pneg %p27
      %p34 = scmp.eq.s32.totalorder %s18, 1
      %p35 = por %p33, %p34
      %p36 = scmp.ne.s32.totalorder %s28, %s31
      %p37 = scmp.eq.s32.totalorder %s18, 0
      %p38 = por %p36, %p37
      %p39 = scmp.ne.s32.totalorder %s28, %s31
      %p40 = scmp.eq.s32.totalorder %s23, 1
      %p41 = por %p39, %p40
      %p42 = scmp.ne.s32.totalorder %s31, %s32
      %p43 = scmp.eq.s32.totalorder %s23, 0
      %p44 = por %p42, %p43
      %p45 = scmp.ne.s32.totalorder %s31, %s32
      %p46 = scmp.eq.s32.totalorder %s24, 1
      %p47 = por %p45, %p46
      %p49 = scmp.ne.s32.totalorder %s32, %s48
      %p50 = scmp.eq.s32.totalorder %s24, 0
      %p51 = por %p49, %p50
      %s53 = sadd.s32 %s52, 1
      %p56 = scmp.eq.s32.totalorder %s18, 1
      %p57 = scmp.ne.s32.totalorder %s52, %s54
      %p58 = scmp.eq.s32.totalorder %s18, 0
      %p59 = por %p57, %p58
      %p60 = scmp.ne.s32.totalorder %s52, %s54
      %p61 = scmp.eq.s32.totalorder %s23, 1
      %p62 = por %p60, %p61
      %p63 = scmp.ne.s32.totalorder %s54, %s55
      %p64 = scmp.eq.s32.totalorder %s23, 0
      %p65 = por %p63, %p64
      %p66 = scmp.ne.s32.totalorder %s54, %s55
      %p67 = scmp.eq.s32.totalorder %s24, 1
      %p68 = por %p66, %p67
      %p70 = scmp.ne.s32.totalorder %s55, %s69
      %p71 = scmp.eq.s32.totalorder %s24, 0
      %p72 = por %p70, %p71
      %s74 = sadd.s32 %s73, 1
      %p77 = scmp.eq.s32.totalorder %s18, 1
      %p78 = scmp.ne.s32.totalorder %s73, %s75
      %p79 = scmp.eq.s32.totalorder %s18, 0
      %p80 = por %p78, %p79
      %p81 = scmp.ne.s32.totalorder %s73, %s75
      %p82 = scmp.eq.s32.totalorder %s23, 1
      %p83 = por %p81, %p82
      %p84 = scmp.ne.s32.totalorder %s75, %s76
      %p85 = scmp.eq.s32.totalorder %s23, 0
      %p86 = por %p84, %p85
      %p87 = scmp.ne.s32.totalorder %s75, %s76
      %p88 = scmp.eq.s32.totalorder %s24, 1
      %p89 = por %p87, %p88
      %p91 = scmp.ne.s32.totalorder %s76, %s90
      %p92 = scmp.eq.s32.totalorder %s24, 0
      %p93 = por %p91, %p92
      %s95 = sadd.s32 %s94, 1
      %p98 = scmp.eq.s32.totalorder %s18, 1
      %p99 = scmp.ne.s32.totalorder %s94, %s96
      %p100 = scmp.eq.s32.totalorder %s18, 0
      %p101 = por %p99, %p100
      %p102 = scmp.ne.s32.totalorder %s94, %s96
      %p103 = scmp.eq.s32.totalorder %s23, 1
      %p104 = por %p102, %p103
      %p105 = scmp.ne.s32.totalorder %s96, %s97
      %p106 = scmp.eq.s32.totalorder %s23, 0
      %p107 = por %p105, %p106
      %p108 = scmp.ne.s32.totalorder %s96, %s97
      %p109 = scmp.eq.s32.totalorder %s24, 1
      %p110 = por %p108, %p109
      %p112 = scmp.ne.s32.totalorder %s97, %s111
      %p113 = scmp.eq.s32.totalorder %s24, 0
      %p114 = por %p112, %p113
      %s116 = sadd.s32 %s115, 1
      %p119 = scmp.eq.s32.totalorder %s18, 1
      %p120 = scmp.ne.s32.totalorder %s115, %s117
      %p121 = scmp.eq.s32.totalorder %s18, 0
      %p122 = por %p120, %p121
      %p123 = scmp.ne.s32.totalorder %s115, %s117
      %p124 = scmp.eq.s32.totalorder %s23, 1
      %p125 = por %p123, %p124
      %p126 = scmp.ne.s32.totalorder %s117, %s118
      %p127 = scmp.eq.s32.totalorder %s23, 0
      %p128 = por %p126, %p127
      %p129 = scmp.ne.s32.totalorder %s117, %s118
      %p130 = scmp.eq.s32.totalorder %s24, 1
      %p131 = por %p129, %p130
      %p133 = scmp.ne.s32.totalorder %s118, %s132
      %p134 = scmp.eq.s32.totalorder %s24, 0
      %p135 = por %p133, %p134
      %s136 = ssub.s32 %s18, %s25
      %p137 = scmp.eq.s32.totalorder %s136, 0
      %s139 = sadd.s32 %s138, 1
      %s140 = scalar_select %p137, %s138, %s139
      %p143 = pneg %p137
      %p144 = scmp.eq.s32.totalorder %s18, 1
      %p145 = por %p143, %p144
      %p146 = scmp.ne.s32.totalorder %s138, %s141
      %p147 = scmp.eq.s32.totalorder %s18, 0
      %p148 = por %p146, %p147
      %p149 = scmp.ne.s32.totalorder %s138, %s141
      %p150 = scmp.eq.s32.totalorder %s23, 1
      %p151 = por %p149, %p150
      %p152 = scmp.ne.s32.totalorder %s141, %s142
      %p153 = scmp.eq.s32.totalorder %s23, 0
      %p154 = por %p152, %p153
      %p155 = scmp.ne.s32.totalorder %s141, %s142
      %p156 = scmp.eq.s32.totalorder %s24, 1
      %p157 = por %p155, %p156
      %p159 = scmp.ne.s32.totalorder %s142, %s158
      %p160 = scmp.eq.s32.totalorder %s24, 0
      %p161 = por %p159, %p160
      %p162 = scmp.le.s32.totalorder 1, %s18
      %p163 = scmp.lt.s32.totalorder %s18, 3
      %p164 = pnand %p162, %p163
      %p165 = pneg %p164
      // Predicated region
      $region9: #{tpu_custom_call.1} parent=5 // pred_check
        _
      $region10: #{tpu_custom_call.1} parent=5 // pred_check_branch
        %167 = sbr.rel (%p164) target = $region12
      $region11: #{tpu_custom_call.1} parent=5 // pred_region
        %s168 = ssub.s32 %s18, 1
        // Predicated region
        $region13: #{tpu_custom_call.1} parent=11 // pred_check
          %p169 = pneg %p65
        $region14: #{tpu_custom_call.1} parent=11 // pred_check_branch
          %171 = sbr.rel (%p169) target = $region16
        $region15: #{tpu_custom_call.1} parent=11 // pred_region
          %s173 = ssub.s32 1024, 1024
          %174 = vsyncadd [#allocation6], %s173
          %s175 = sshll.u32 [#allocation5], 4
          %s176 = int_to_ptr.vmem [resolvable:$true] %s175
          %181 = dma.hbm_to_vmem [thread:$0]  %s1, 1024, %s176, [#allocation6], 64, 64, 4
        $region16: #{tpu_custom_call.1} parent=11 // pred_fallthru
          _
        // Predicated region
        $region17: #{tpu_custom_call.1} parent=11 // pred_check
          %p182 = pneg %p86
        $region18: #{tpu_custom_call.1} parent=11 // pred_check_branch
          %184 = sbr.rel (%p182) target = $region20
        $region19: #{tpu_custom_call.1} parent=11 // pred_region
          _
        $region20: #{tpu_custom_call.1} parent=11 // pred_fallthru
          _
        // Predicated region
        $region21: #{tpu_custom_call.1} parent=11 // pred_check
          %p185 = pneg %p107
        $region22: #{tpu_custom_call.1} parent=11 // pred_check_branch
          %187 = sbr.rel (%p185) target = $region24
        $region23: #{tpu_custom_call.1} parent=11 // pred_region
          %s189 = ssub.s32 1024, 1024
          %190 = vsyncadd [#allocation6], %s189
          %s191 = sshll.u32 [#allocation7], 4
          %s192 = int_to_ptr.vmem [resolvable:$true] %s191
          %197 = dma.hbm_to_vmem [thread:$0]  %s3, 1024, %s192, [#allocation6], 64, 64, 4
        $region24: #{tpu_custom_call.1} parent=11 // pred_fallthru
          _
        // Predicated region
        $region25: #{tpu_custom_call.1} parent=11 // pred_check
          %p198 = pneg %p128
        $region26: #{tpu_custom_call.1} parent=11 // pred_check_branch
          %200 = sbr.rel (%p198) target = $region28
        $region27: #{tpu_custom_call.1} parent=11 // pred_region
          _
        $region28: #{tpu_custom_call.1} parent=11 // pred_fallthru
          _
      $region12: #{tpu_custom_call.1} parent=5 // pred_fallthru
        _
      %p201 = scmp.lt.s32.totalorder %s18, 2
      // Predicated region
      $region29: #{tpu_custom_call.1} parent=5 // pred_check
        %p202 = pneg %p201
      $region30: #{tpu_custom_call.1} parent=5 // pred_check_branch
        %204 = sbr.rel (%p202) target = $region32
      $region31: #{tpu_custom_call.1} parent=5 // pred_region
        // Predicated region
        $region33: #{tpu_custom_call.1} parent=31 // pred_check
          %p205 = pneg %p38
        $region34: #{tpu_custom_call.1} parent=31 // pred_check_branch
          %207 = sbr.rel (%p205) target = $region36
        $region35: #{tpu_custom_call.1} parent=31 // pred_region
          %s208 = sand.u32 %s28, 1
          %s209 = scalar_lea.sflag [#allocation3], %s208
          %s210 = sand.u32 %s28, 1
          %s211 = smul.addr %s210, 32
          %s212 = scalar_lea.vmem [#allocation2], %s211
          %s213 = smul.u32 4, %s18
          %s215 = ssub.s32 512, 512
          %216 = vsyncadd %s209, %s215
          %s217 = smul.addr %s213, 128
          %s218 = scalar_lea.hbm %s0, %s217
          %s219 = sshll.u32 %s212, 4
          %s220 = int_to_ptr.vmem [resolvable:$true] %s219
          %225 = dma.hbm_to_vmem [thread:$0]  %s218, 512, %s220, %s209, 128, 128, 8
        $region36: #{tpu_custom_call.1} parent=31 // pred_fallthru
          _
      $region32: #{tpu_custom_call.1} parent=5 // pred_fallthru
        _
      %p226 = scmp.le.s32.totalorder 1, %s18
      %p227 = scmp.lt.s32.totalorder %s18, 3
      %p228 = pnand %p226, %p227
      %p229 = pneg %p228
      // Predicated region
      $region37: #{tpu_custom_call.1} parent=5 // pred_check
        _
      $region38: #{tpu_custom_call.1} parent=5 // pred_check_branch
        %231 = sbr.rel (%p228) target = $region40
      $region39: #{tpu_custom_call.1} parent=5 // pred_region
        %s232 = ssub.s32 %s18, 1
        %s233 = sand.u32 %s31, 1
        %s234 = scalar_lea.sflag [#allocation3], %s233
        %s235 = sand.u32 %s31, 1
        %s236 = smul.addr %s235, 32
        %s237 = scalar_lea.vmem [#allocation2], %s236
        // Predicated region
        $region41: #{tpu_custom_call.1} parent=39 // pred_check
          %p238 = pneg %p44
        $region42: #{tpu_custom_call.1} parent=39 // pred_check_branch
          %240 = sbr.rel (%p238) target = $region44
        $region43: #{tpu_custom_call.1} parent=39 // pred_region
          %241 = dma.done %s234, 512
        $region44: #{tpu_custom_call.1} parent=39 // pred_fallthru
          _
        // Predicated region
        $region45: #{tpu_custom_call.1} parent=39 // pred_check
          %p242 = pneg %p65
        $region46: #{tpu_custom_call.1} parent=39 // pred_check_branch
          %244 = sbr.rel (%p242) target = $region48
        $region47: #{tpu_custom_call.1} parent=39 // pred_region
          %245 = dma.done [#allocation6], 1024
        $region48: #{tpu_custom_call.1} parent=39 // pred_fallthru
          _
        // Predicated region
        $region49: #{tpu_custom_call.1} parent=39 // pred_check
          %p246 = pneg %p107
        $region50: #{tpu_custom_call.1} parent=39 // pred_check_branch
          %248 = sbr.rel (%p246) target = $region52
        $region51: #{tpu_custom_call.1} parent=39 // pred_region
          %249 = dma.done [#allocation6], 1024
        $region52: #{tpu_custom_call.1} parent=39 // pred_fallthru
          _
        %s250 = sand.u32 %s31, 1
        %s251 = scalar_lea.sflag [#allocation3], %s250
        %s252 = sand.u32 %s31, 1
        %s253 = smul.addr %s252, 32
        %s254 = scalar_lea.vmem [#allocation2], %s253
        %p255 = pneg %p44
        %p256 = pneg %p41
        %p257 = pneg %p65
        %p258 = pneg %p62
        %p259 = pneg %p86
        %p260 = pneg %p83
        %p261 = pneg %p107
        %p262 = pneg %p104
        %p263 = pneg %p128
        %p264 = pneg %p125
        %p265 = pneg %p154
        %p266 = pneg %p151
        %s267 = sand.u32 %s141, 1
        %s268 = scalar_lea.sflag [#allocation4], %s267
        %s269 = sand.u32 %s141, 1
        %s270 = smul.addr %s269, 32
        %s271 = scalar_lea.vmem [#allocation8], %s270
        %s272 = smul.u32 4, %s23
        %s273 = smul.u32 4, %s23
        %v275 = vld [vmem:[%s237] sm:$0xff]
        %v276 = vld [vmem:[%s237 + $0x8] sm:$0xff]
        %v277 = vld [vmem:[%s237 + $0x10] sm:$0xff]
        %v278 = vld [vmem:[%s237 + $0x18] sm:$0xff]
        %v279 = vpack.c.bf16 %v276, %v275
        %v280 = vpack.c.bf16 %v278, %v277
        %v281 = vld [vmem:[#allocation5] sm:$0xf]
        %v282 = vld [vmem:[#allocation5 + $0x4] sm:$0xf]
        %v283 = vld [vmem:[#allocation5 + $0x8] sm:$0xf]
        %v284 = vld [vmem:[#allocation5 + $0xc] sm:$0xf]
        %v285 = vld [vmem:[#allocation5 + $0x10] sm:$0xf]
        %v286 = vld [vmem:[#allocation5 + $0x14] sm:$0xf]
        %v287 = vld [vmem:[#allocation5 + $0x18] sm:$0xf]
        %v288 = vld [vmem:[#allocation5 + $0x1c] sm:$0xf]
        %v289 = vld [vmem:[#allocation5 + $0x20] sm:$0xf]
        %v290 = vld [vmem:[#allocation5 + $0x24] sm:$0xf]
        %v291 = vld [vmem:[#allocation5 + $0x28] sm:$0xf]
        %v292 = vld [vmem:[#allocation5 + $0x2c] sm:$0xf]
        %v293 = vld [vmem:[#allocation5 + $0x30] sm:$0xf]
        %v294 = vld [vmem:[#allocation5 + $0x34] sm:$0xf]
        %v295 = vld [vmem:[#allocation5 + $0x38] sm:$0xf]
        %v296 = vld [vmem:[#allocation5 + $0x3c] sm:$0xf]
        %v297 = vld [vmem:[%s2] sm:$0x1]
        %v299 = vlaneseq
        %v300 = vshrl.u32 %v299, 7
        %v301 = vsub.s32 0, %v300
        %v302 = vrot.slane %v297, %v301
        %v320 = vunpack.c.l.b16 %v281
        %v321 = vunpack.c.l.b16 %v282
        %v322 = vunpack.c.l.b16 %v283
        %v323 = vunpack.c.l.b16 %v284
        %v324 = vunpack.c.l.b16 %v285
        %v325 = vunpack.c.l.b16 %v286
        %v326 = vunpack.c.l.b16 %v287
        %v327 = vunpack.c.l.b16 %v288
        %v328 = vunpack.c.l.b16 %v289
        %v329 = vunpack.c.l.b16 %v290
        %v330 = vunpack.c.l.b16 %v291
        %v331 = vunpack.c.l.b16 %v292
        %v332 = vunpack.c.l.b16 %v293
        %v333 = vunpack.c.l.b16 %v294
        %v334 = vunpack.c.l.b16 %v295
        %v335 = vunpack.c.l.b16 %v296
        %v336 = vpack.c.b16 %v321, %v320
        %v337 = vpack.c.b16 %v323, %v322
        %v338 = vpack.c.b16 %v325, %v324
        %v339 = vpack.c.b16 %v327, %v326
        %v340 = vpack.c.b16 %v329, %v328
        %v341 = vpack.c.b16 %v331, %v330
        %v342 = vpack.c.b16 %v333, %v332
        %v343 = vpack.c.b16 %v335, %v334
        %352 = vmatprep.subr.bf16.mxu0 0
        %353 = vmatpush1.bf16.msra.mxu0 %v336
        %354 = vmatprep.subr.bf16.mxu0 0
        %355 = vmatpush1.bf16.msra.mxu0 %v337
        %356 = vmatprep.subr.bf16.mxu0 0
        %357 = vmatpush1.bf16.msra.mxu0 %v338
        %358 = vmatprep.subr.bf16.mxu0 0
        %359 = vmatpush1.bf16.msra.mxu0 %v339
        %360 = vmatprep.subr.bf16.mxu0 0
        %361 = vmatpush1.bf16.msra.mxu0 %v340
        %362 = vmatprep.subr.bf16.mxu0 0
        %363 = vmatpush1.bf16.msra.mxu0 %v341
        %364 = vmatprep.subr.bf16.mxu0 0
        %365 = vmatpush1.bf16.msra.mxu0 %v342
        %366 = vmatprep.subr.bf16.mxu0 0
        %367 = vmatpush1.bf16.msra.mxu0 %v343
        %368 = vmatprep.subr.bf16.mxu0 0
        %369 = vmatpush1.bf16.msra.mxu0 0
        %370 = vmatprep.subr.bf16.mxu0 0
        %371 = vmatpush1.bf16.msra.mxu0 0
        %372 = vmatprep.subr.bf16.mxu0 0
        %373 = vmatpush1.bf16.msra.mxu0 0
        %374 = vmatprep.subr.bf16.mxu0 0
        %375 = vmatpush1.bf16.msra.mxu0 0
        %376 = vmatprep.subr.bf16.mxu0 0
        %377 = vmatpush1.bf16.msra.mxu0 0
        %378 = vmatprep.subr.bf16.mxu0 0
        %379 = vmatpush1.bf16.msra.mxu0 0
        %380 = vmatprep.subr.bf16.mxu0 0
        %381 = vmatpush1.bf16.msra.mxu0 0
        %382 = vmatprep.subr.bf16.mxu0 0
        %383 = vmatpush1.bf16.msra.mxu0 0
        %384 = vmatprep.mubr.bf16.mxu0 0
        %385 = vmatmul.mubr.bf16.gmra.mrb[0].mxu0 %v279
        %v386 = vpop.f32.mrb[0].mxu0
        %v387 = vadd.f32 %v302, %v386
        %v388 = vpop.f32.mrb[0].mxu0
        %v389 = vpop.f32.mrb[0].mxu0
        %v390 = vadd.f32 %v302, %v389
        %v391 = vpop.f32.mrb[0].mxu0
        %392 = vmatprep.mubr.bf16.mxu0 0
        %393 = vmatmul.mubr.bf16.gmra.mrb[0].mxu0 %v280
        %v394 = vpop.f32.mrb[0].mxu0
        %v395 = vadd.f32 %v302, %v394
        %v396 = vpop.f32.mrb[0].mxu0
        %v397 = vpop.f32.mrb[0].mxu0
        %v398 = vadd.f32 %v302, %v397
        %v399 = vpop.f32.mrb[0].mxu0
        %400 = vdwg.mxu0
        %v401 = vmax.f32 %v387, 0.0
        %v402 = vmax.f32 %v390, 0.0
        %v403 = vmax.f32 %v395, 0.0
        %v404 = vmax.f32 %v398, 0.0
        %v405 = vpack.c.bf16 %v402, %v401
        %v406 = vpack.c.bf16 %v404, %v403
        %v407 = vld [vmem:[#allocation7] sm:$0xf]
        %v408 = vld [vmem:[#allocation7 + $0x4] sm:$0xf]
        %v409 = vld [vmem:[#allocation7 + $0x8] sm:$0xf]
        %v410 = vld [vmem:[#allocation7 + $0xc] sm:$0xf]
        %v411 = vld [vmem:[#allocation7 + $0x10] sm:$0xf]
        %v412 = vld [vmem:[#allocation7 + $0x14] sm:$0xf]
        %v413 = vld [vmem:[#allocation7 + $0x18] sm:$0xf]
        %v414 = vld [vmem:[#allocation7 + $0x1c] sm:$0xf]
        %v415 = vld [vmem:[#allocation7 + $0x20] sm:$0xf]
        %v416 = vld [vmem:[#allocation7 + $0x24] sm:$0xf]
        %v417 = vld [vmem:[#allocation7 + $0x28] sm:$0xf]
        %v418 = vld [vmem:[#allocation7 + $0x2c] sm:$0xf]
        %v419 = vld [vmem:[#allocation7 + $0x30] sm:$0xf]
        %v420 = vld [vmem:[#allocation7 + $0x34] sm:$0xf]
        %v421 = vld [vmem:[#allocation7 + $0x38] sm:$0xf]
        %v422 = vld [vmem:[#allocation7 + $0x3c] sm:$0xf]
        %v423 = vld [vmem:[%s4] sm:$0x1]
        %v425 = vlaneseq
        %v426 = vshrl.u32 %v425, 7
        %v427 = vsub.s32 0, %v426
        %v428 = vrot.slane %v423, %v427
        %v446 = vunpack.c.l.b16 %v407
        %v447 = vunpack.c.l.b16 %v408
        %v448 = vunpack.c.l.b16 %v409
        %v449 = vunpack.c.l.b16 %v410
        %v450 = vunpack.c.l.b16 %v411
        %v451 = vunpack.c.l.b16 %v412
        %v452 = vunpack.c.l.b16 %v413
        %v453 = vunpack.c.l.b16 %v414
        %v454 = vunpack.c.l.b16 %v415
        %v455 = vunpack.c.l.b16 %v416
        %v456 = vunpack.c.l.b16 %v417
        %v457 = vunpack.c.l.b16 %v418
        %v458 = vunpack.c.l.b16 %v419
        %v459 = vunpack.c.l.b16 %v420
        %v460 = vunpack.c.l.b16 %v421
        %v461 = vunpack.c.l.b16 %v422
        %v462 = vpack.c.b16 %v447, %v446
        %v463 = vpack.c.b16 %v449, %v448
        %v464 = vpack.c.b16 %v451, %v450
        %v465 = vpack.c.b16 %v453, %v452
        %v466 = vpack.c.b16 %v455, %v454
        %v467 = vpack.c.b16 %v457, %v456
        %v468 = vpack.c.b16 %v459, %v458
        %v469 = vpack.c.b16 %v461, %v460
        %478 = vmatprep.subr.bf16.mxu0 0
        %479 = vmatpush1.bf16.msra.mxu0 %v462
        %480 = vmatprep.subr.bf16.mxu0 0
        %481 = vmatpush1.bf16.msra.mxu0 %v463
        %482 = vmatprep.subr.bf16.mxu0 0
        %483 = vmatpush1.bf16.msra.mxu0 %v464
        %484 = vmatprep.subr.bf16.mxu0 0
        %485 = vmatpush1.bf16.msra.mxu0 %v465
        %486 = vmatprep.subr.bf16.mxu0 0
        %487 = vmatpush1.bf16.msra.mxu0 %v466
        %488 = vmatprep.subr.bf16.mxu0 0
        %489 = vmatpush1.bf16.msra.mxu0 %v467
        %490 = vmatprep.subr.bf16.mxu0 0
        %491 = vmatpush1.bf16.msra.mxu0 %v468
        %492 = vmatprep.subr.bf16.mxu0 0
        %493 = vmatpush1.bf16.msra.mxu0 %v469
        %494 = vmatprep.subr.bf16.mxu0 0
        %495 = vmatpush1.bf16.msra.mxu0 0
        %496 = vmatprep.subr.bf16.mxu0 0
        %497 = vmatpush1.bf16.msra.mxu0 0
        %498 = vmatprep.subr.bf16.mxu0 0
        %499 = vmatpush1.bf16.msra.mxu0 0
        %500 = vmatprep.subr.bf16.mxu0 0
        %501 = vmatpush1.bf16.msra.mxu0 0
        %502 = vmatprep.subr.bf16.mxu0 0
        %503 = vmatpush1.bf16.msra.mxu0 0
        %504 = vmatprep.subr.bf16.mxu0 0
        %505 = vmatpush1.bf16.msra.mxu0 0
        %506 = vmatprep.subr.bf16.mxu0 0
        %507 = vmatpush1.bf16.msra.mxu0 0
        %508 = vmatprep.subr.bf16.mxu0 0
        %509 = vmatpush1.bf16.msra.mxu0 0
        %510 = vmatprep.mubr.bf16.mxu0 0
        %511 = vmatmul.mubr.bf16.gmra.mrb[0].mxu0 %v405
        %v512 = vpop.f32.mrb[0].mxu0
        %v513 = vadd.f32 %v428, %v512
        %v514 = vpop.f32.mrb[0].mxu0
        %v515 = vpop.f32.mrb[0].mxu0
        %v516 = vadd.f32 %v428, %v515
        %v517 = vpop.f32.mrb[0].mxu0
        %518 = vmatprep.mubr.bf16.mxu0 0
        %519 = vmatmul.mubr.bf16.gmra.mrb[0].mxu0 %v406
        %v520 = vpop.f32.mrb[0].mxu0
        %v521 = vadd.f32 %v428, %v520
        %v522 = vpop.f32.mrb[0].mxu0
        %v523 = vpop.f32.mrb[0].mxu0
        %v524 = vadd.f32 %v428, %v523
        %v525 = vpop.f32.mrb[0].mxu0
        %526 = vdwg.mxu0
        %527 = vmax.xlane.f32.xlu0 %v513
        %v528 = vpop.xlane.xlu0 %527
        %529 = vmax.xlane.f32.xlu0 %v516
        %v530 = vpop.xlane.xlu0 %529
        %531 = vmax.xlane.f32.xlu0 %v521
        %v532 = vpop.xlane.xlu0 %531
        %533 = vmax.xlane.f32.xlu0 %v524
        %v534 = vpop.xlane.xlu0 %533
        %v535 = vsub.f32 %v513, %v528
        %v536 = vsub.f32 %v516, %v530
        %v537 = vsub.f32 %v521, %v532
        %v538 = vsub.f32 %v524, %v534
        %v539 = vmul.f32 %v535, 1.442695
        %v540 = vpow.pop %v539
        %v541 = vmul.f32 %v536, 1.442695
        %v542 = vpow.pop %v541
        %v543 = vmul.f32 %v537, 1.442695
        %v544 = vpow.pop %v543
        %v545 = vmul.f32 %v538, 1.442695
        %v546 = vpow.pop %v545
        %547 = vadd.xlane.f32.xlu0 %v540
        %v548 = vpop.xlane.xlu0 %547
        %549 = vadd.xlane.f32.xlu0 %v542
        %v550 = vpop.xlane.xlu0 %549
        %551 = vadd.xlane.f32.xlu0 %v544
        %v552 = vpop.xlane.xlu0 %551
        %553 = vadd.xlane.f32.xlu0 %v546
        %v554 = vpop.xlane.xlu0 %553
        %v555 = vrcp.pop %v548
        %v556 = vrcp.pop %v550
        %v557 = vrcp.pop %v552
        %v558 = vrcp.pop %v554
        %v559 = vmul.f32 %v540, %v555
        %v560 = vmul.f32 %v542, %v556
        %v561 = vmul.f32 %v544, %v557
        %v562 = vmul.f32 %v546, %v558
        %563 = vst [vmem:[%s271] sm:$0xff] %v559
        %564 = vst [vmem:[%s271 + $0x8] sm:$0xff] %v560
        %565 = vst [vmem:[%s271 + $0x10] sm:$0xff] %v561
        %566 = vst [vmem:[%s271 + $0x18] sm:$0xff] %v562
        %s567 = sand.u32 %s141, 1
        %s568 = scalar_lea.sflag [#allocation4], %s567
        %s569 = sand.u32 %s141, 1
        %s570 = smul.addr %s569, 32
        %s571 = scalar_lea.vmem [#allocation8], %s570
        // Predicated region
        $region53: #{tpu_custom_call.1} parent=39 // pred_check
          %p572 = pneg %p151
        $region54: #{tpu_custom_call.1} parent=39 // pred_check_branch
          %574 = sbr.rel (%p572) target = $region56
        $region55: #{tpu_custom_call.1} parent=39 // pred_region
          %s575 = smul.u32 4, %s23
          %s577 = ssub.s32 512, 512
          %578 = vsyncadd %s568, %s577
          %s579 = smul.addr %s575, 128
          %s580 = scalar_lea.hbm %s5, %s579
          %s581 = sshll.u32 %s571, 4
          %s582 = int_to_ptr.vmem [resolvable:$true] %s581
          %587 = dma.vmem_to_hbm [thread:$0]  %s582, 512, %s580, %s568, 128, 128, 8
        $region56: #{tpu_custom_call.1} parent=39 // pred_fallthru
          _
      $region40: #{tpu_custom_call.1} parent=5 // pred_fallthru
        _
      %p588 = scmp.le.s32.totalorder 2, %s18
      // Predicated region
      $region57: #{tpu_custom_call.1} parent=5 // pred_check
        %p589 = pneg %p588
      $region58: #{tpu_custom_call.1} parent=5 // pred_check_branch
        %591 = sbr.rel (%p589) target = $region60
      $region59: #{tpu_custom_call.1} parent=5 // pred_region
        %s592 = ssub.s32 %s18, 2
        // Predicated region
        $region61: #{tpu_custom_call.1} parent=59 // pred_check
          %p593 = pneg %p157
        $region62: #{tpu_custom_call.1} parent=59 // pred_check_branch
          %595 = sbr.rel (%p593) target = $region64
        $region63: #{tpu_custom_call.1} parent=59 // pred_region
          %s596 = sand.u32 %s142, 1
          %s597 = scalar_lea.sflag [#allocation4], %s596
          %s598 = sand.u32 %s142, 1
          %s599 = smul.addr %s598, 32
          %s600 = scalar_lea.vmem [#allocation8], %s599
          %601 = dma.done %s597, 512
        $region64: #{tpu_custom_call.1} parent=59 // pred_fallthru
          _
      $region60: #{tpu_custom_call.1} parent=5 // pred_fallthru
        _
    $region6: #{tpu_custom_call.1} parent=1 // loop_footer
      %s22 = sadd.s32 1, %s18
    $region7: #{tpu_custom_call.1} parent=1 // loop_footer_branch
      %17 = sbr.rel target = $region3
    $region8: #{tpu_custom_call.1} parent=1 // loop_exit
      _
    %602 = vsyncpa [#allocation3], 1
    %s603 = scalar_lea.sflag [#allocation3], 1
    %604 = vsyncpa %s603, 1
    %605 = vsyncpa [#allocation6], 1
    %606 = vsyncpa [#allocation4], 1
    %s607 = scalar_lea.sflag [#allocation4], 1
    %608 = vsyncpa %s607, 1

</llo_original>
